<compile_context>
chip_gen: v7x
topology: tpu7x:2x2x1
jax: 0.10.0
libtpu: 0.0.40
codegen_flags: <defaults>
</compile_context>

<pallas_src>
import jax
import jax.numpy as jnp
from jax.experimental import pallas as pl
from jax.experimental.pallas import tpu as pltpu


def conprefix_kv_kernel(x_ref, wd_ref, bd_ref, wu_ref, bu_ref, kv_ref):
    # x_ref : (TM, dim)         token tile (compute dtype, e.g. bf16)
    # wd_ref: (dim, mid_dim)    down-proj weight, VMEM-resident (constant index_map)
    # bd_ref: (1, mid_dim)      down-proj bias (f32)
    # wu_ref: (mid_dim, 2*dim)  up-proj weight, VMEM-resident
    # bu_ref: (1, 2*dim)        up-proj bias (f32)
    # kv_ref: (TM, 2*dim)       output tile (f32) — lane-dense, no zero-q slab
    h = jnp.dot(x_ref[...], wd_ref[...], preferred_element_type=jnp.float32)
    h = jnp.tanh(h + bd_ref[...])
    kv = jnp.dot(h.astype(wu_ref.dtype), wu_ref[...],
                 preferred_element_type=jnp.float32)
    kv_ref[...] = (kv + bu_ref[...]).astype(kv_ref.dtype)


def conprefix_forward(x, w_down, b_down, w_up, b_up, *,
                      block_m=512, compute_dtype=jnp.bfloat16):
    """x: (B, L, dim). Weights pre-transposed to (in, out). Returns (B, L, 3*dim) f32."""
    B, L, dim = x.shape
    mid_dim = w_down.shape[1]
    assert w_down.shape == (dim, mid_dim)
    assert w_up.shape == (mid_dim, 2 * dim)

    M = B * L
    # TM: either a multiple-of-8 tile (block_m) or the full M when M is small.
    TM = block_m if M > block_m else M
    grid_m = pl.cdiv(M, TM)

    x2d = x.reshape(M, dim).astype(compute_dtype)
    wd = w_down.astype(compute_dtype)
    wu = w_up.astype(compute_dtype)
    bd2d = b_down.reshape(1, mid_dim).astype(jnp.float32)
    bu2d = b_up.reshape(1, 2 * dim).astype(jnp.float32)

    # VMEM budget: double-buffered x / kv tiles + resident weights + the f32
    # intermediate (TM, mid_dim).  Sized explicitly so it fits v7x's 64 MiB
    # physical VMEM and v5e's small scoped default.
    in_bytes = jnp.dtype(compute_dtype).itemsize
    vmem_est = (
        2 * TM * dim * in_bytes              # x tiles (double-buffered)
        + 2 * TM * 2 * dim * 4               # kv tiles (double-buffered, f32)
        + 2 * (dim * mid_dim + mid_dim * 2 * dim) * in_bytes  # weights
        + 2 * (mid_dim + 2 * dim) * 4        # biases
        + TM * mid_dim * 4                   # tanh intermediate
    )
    vmem_limit = int(min(max(2 * vmem_est, 16 * 1024 * 1024), 48 * 1024 * 1024))

    grid_spec = pl.GridSpec(
        grid=(grid_m,),
        in_specs=[
            pl.BlockSpec((TM, dim), lambda i: (i, 0)),
            pl.BlockSpec((dim, mid_dim), lambda i: (0, 0)),
            pl.BlockSpec((1, mid_dim), lambda i: (0, 0)),
            pl.BlockSpec((mid_dim, 2 * dim), lambda i: (0, 0)),
            pl.BlockSpec((1, 2 * dim), lambda i: (0, 0)),
        ],
        out_specs=pl.BlockSpec((TM, 2 * dim), lambda i: (i, 0)),
    )

    kv2d = pl.pallas_call(
        conprefix_kv_kernel,
        out_shape=jax.ShapeDtypeStruct((M, 2 * dim), jnp.float32),
        grid_spec=grid_spec,
        compiler_params=pltpu.CompilerParams(
            dimension_semantics=("parallel",),
            vmem_limit_bytes=vmem_limit,
        ),
    )(x2d, wd, bd2d, wu, bu2d)

    kv = kv2d.reshape(B, L, 2 * dim)
    # q-zeros prefix assembled outside the kernel (pure zero writes; no reason to
    # stream them through VMEM).
    q = jnp.zeros((B, L, dim), dtype=kv.dtype)
    return jnp.concatenate([q, kv], axis=-1)


def reference_forward(x, w_down, b_down, w_up, b_up):
    h = jnp.tanh(jnp.einsum("bld,dm->blm", x, w_down) + b_down)
    kv = jnp.einsum("blm,me->ble", h, w_up) + b_up
    q = jnp.zeros((x.shape[0], x.shape[1], x.shape[2]), dtype=kv.dtype)
    return jnp.concatenate([q, kv], axis=-1)


if __name__ == "__main__":
    B, L, dim, mid_dim = 2, 8, 32, 256

    key = jax.random.PRNGKey(0)
    kx, kwd, kbd, kwu, kbu = jax.random.split(key, 5)

    x = jax.random.normal(kx, (B, L, dim), dtype=jnp.float32)
    # PyTorch nn.Linear-shaped params, stored pre-transposed as (in, out).
    w_down = jax.random.normal(kwd, (dim, mid_dim), dtype=jnp.float32) * (1.0 / (dim ** 0.5))
    b_down = jax.random.normal(kbd, (mid_dim,), dtype=jnp.float32) * 0.01
    w_up = jax.random.normal(kwu, (mid_dim, 2 * dim), dtype=jnp.float32) * (1.0 / (mid_dim ** 0.5))
    b_up = jax.random.normal(kbu, (2 * dim,), dtype=jnp.float32) * 0.01

    out = conprefix_forward(x, w_down, b_down, w_up, b_up)
    jax.block_until_ready(out)

    ref = reference_forward(x, w_down, b_down, w_up, b_up)
    assert out.shape == (B, L, 3 * dim)
    # bf16 MXU inputs with f32 accumulation: compare against the f32 reference
    # with a correspondingly looser tolerance.
    assert jnp.allclose(out, ref, atol=5e-2, rtol=5e-2), "mismatch vs reference"
    # The q third must be exactly zero.
    assert jnp.all(out[..., :dim] == 0.0)

    print("KERNEL_OK")
</pallas_src>

<mosaic_0001>
module attributes {stable_mosaic.version = 11 : i64} {
  func.func @conprefix_kv_kernel(%arg0: i32, %arg1: memref<16x32xbf16, #tpu.memory_space<vmem>>, %arg2: memref<32x256xbf16, #tpu.memory_space<vmem>>, %arg3: memref<1x256xf32, #tpu.memory_space<vmem>>, %arg4: memref<256x64xbf16, #tpu.memory_space<vmem>>, %arg5: memref<1x64xf32, #tpu.memory_space<vmem>>, %arg6: memref<16x64xf32, #tpu.memory_space<vmem>>) attributes {dimension_semantics = [#tpu.dimension_semantics<parallel>], iteration_bounds = array<i64: 1>, scalar_prefetch = 0 : i64, scratch_operands = 0 : i64, tpu.core_type = #tpu.core_type<tc>, window_params = [{transform_indices = @transform_0, window_bounds = array<i64: 16, 32>}, {pipeline_mode = #tpu.pipeline_mode<synchronous>, transform_indices = @transform_1, window_bounds = array<i64: 32, 256>}, {pipeline_mode = #tpu.pipeline_mode<synchronous>, transform_indices = @transform_2, window_bounds = array<i64: 1, 256>}, {pipeline_mode = #tpu.pipeline_mode<synchronous>, transform_indices = @transform_3, window_bounds = array<i64: 256, 64>}, {pipeline_mode = #tpu.pipeline_mode<synchronous>, transform_indices = @transform_4, window_bounds = array<i64: 1, 64>}, {transform_indices = @transform_5, window_bounds = array<i64: 16, 64>}]} {
    %c0 = arith.constant 0 : index
    %c0_0 = arith.constant 0 : index
    %0 = vector.load %arg1[%c0, %c0_0] : memref<16x32xbf16, #tpu.memory_space<vmem>>, vector<16x32xbf16>
    %c0_1 = arith.constant 0 : index
    %c0_2 = arith.constant 0 : index
    %1 = vector.load %arg2[%c0_1, %c0_2] : memref<32x256xbf16, #tpu.memory_space<vmem>>, vector<32x256xbf16>
    %cst = arith.constant dense<0.000000e+00> : vector<16x256xf32>
    %2 = tpu.matmul %0, %1, %cst {dimension_numbers = #tpu.dot_dimension_numbers<[1], [0], [0], [1], [0, 0, 1, 1], [], []>} : vector<16x32xbf16>, vector<32x256xbf16>, vector<16x256xf32> -> vector<16x256xf32>
    %c0_3 = arith.constant 0 : index
    %c0_4 = arith.constant 0 : index
    %3 = vector.load %arg3[%c0_3, %c0_4] : memref<1x256xf32, #tpu.memory_space<vmem>>, vector<1x256xf32>
    %4 = vector.broadcast %3 : vector<1x256xf32> to vector<16x256xf32>
    %5 = arith.addf %2, %4 : vector<16x256xf32>
    %6 = math.tanh %5 : vector<16x256xf32>
    %7 = arith.truncf %6 : vector<16x256xf32> to vector<16x256xbf16>
    %c0_5 = arith.constant 0 : index
    %c0_6 = arith.constant 0 : index
    %8 = vector.load %arg4[%c0_5, %c0_6] : memref<256x64xbf16, #tpu.memory_space<vmem>>, vector<256x64xbf16>
    %cst_7 = arith.constant dense<0.000000e+00> : vector<16x64xf32>
    %9 = tpu.matmul %7, %8, %cst_7 {dimension_numbers = #tpu.dot_dimension_numbers<[1], [0], [0], [1], [0, 0, 1, 1], [], []>} : vector<16x256xbf16>, vector<256x64xbf16>, vector<16x64xf32> -> vector<16x64xf32>
    %c0_8 = arith.constant 0 : index
    %c0_9 = arith.constant 0 : index
    %10 = vector.load %arg5[%c0_8, %c0_9] : memref<1x64xf32, #tpu.memory_space<vmem>>, vector<1x64xf32>
    %11 = vector.broadcast %10 : vector<1x64xf32> to vector<16x64xf32>
    %12 = arith.addf %9, %11 : vector<16x64xf32>
    %c0_10 = arith.constant 0 : index
    %c0_11 = arith.constant 0 : index
    %13 = vector.load %arg6[%c0_10, %c0_11] : memref<16x64xf32, #tpu.memory_space<vmem>>, vector<16x64xf32>
    tpu.vector_store %arg6[%c0_10, %c0_11], %12 {strides = array<i32>} : memref<16x64xf32, #tpu.memory_space<vmem>>, vector<16x64xf32>,
    return
  }
  func.func @transform_0(%arg0: i32) -> (i32, i32) {
    %c0_i32 = arith.constant 0 : i32
    %c0_i32_0 = arith.constant 0 : i32
    return %arg0, %c0_i32 : i32, i32
  }
  func.func @transform_1(%arg0: i32) -> (i32, i32) {
    %c0_i32 = arith.constant 0 : i32
    %c0_i32_0 = arith.constant 0 : i32
    %c0_i32_1 = arith.constant 0 : i32
    return %c0_i32, %c0_i32_0 : i32, i32
  }
  func.func @transform_2(%arg0: i32) -> (i32, i32) {
    %c0_i32 = arith.constant 0 : i32
    %c0_i32_0 = arith.constant 0 : i32
    %c0_i32_1 = arith.constant 0 : i32
    return %c0_i32, %c0_i32_0 : i32, i32
  }
  func.func @transform_3(%arg0: i32) -> (i32, i32) {
    %c0_i32 = arith.constant 0 : i32
    %c0_i32_0 = arith.constant 0 : i32
    %c0_i32_1 = arith.constant 0 : i32
    return %c0_i32, %c0_i32_0 : i32, i32
  }
  func.func @transform_4(%arg0: i32) -> (i32, i32) {
    %c0_i32 = arith.constant 0 : i32
    %c0_i32_0 = arith.constant 0 : i32
    %c0_i32_1 = arith.constant 0 : i32
    return %c0_i32, %c0_i32_0 : i32, i32
  }
  func.func @transform_5(%arg0: i32) -> (i32, i32) {
    %c0_i32 = arith.constant 0 : i32
    %c0_i32_0 = arith.constant 0 : i32
    return %arg0, %c0_i32 : i32, i32
  }
}

</mosaic_0001>

<llo_original>
// kernel: tpu_custom_call.1
$region0: #{tpu_custom_call.1}
  #allocation0 [shape = 'u32[]', space=smem, size = 0x4, offset = 0x4, fixed_abs, tag = 'smem constant byte address 0x4 - core index']
  #allocation1 [shape = 'u32[144,128]{1,0:T(1,128)}', space=vmem, size = 0x12000, scoped, tag = 'internal scratch']
  %s0 = inlined_call_operand.vmem [shape: bf16[16,32], index: 0, kind: input, shape index: {}]
  %s1 = inlined_call_operand.vmem [shape: bf16[32,256], index: 1, kind: input, shape index: {}]
  %s2 = inlined_call_operand.vmem [shape: f32[1,256], index: 2, kind: input, shape index: {}]
  %s3 = inlined_call_operand.vmem [shape: bf16[256,64], index: 3, kind: input, shape index: {}]
  %s4 = inlined_call_operand.vmem [shape: f32[1,64], index: 4, kind: input, shape index: {}]
  %s5 = inlined_call_operand.hbm [shape: f32[16,64], index: 5, kind: output, shape index: {}]
  %s6 = sld [smem:[#allocation0]]
  $region30: #{tpu_custom_call.1} parent=0
    _
  %s8 = ssub.s32 1, %s6
  %s9 = scalar_select 0, %s8, %s6
  $region1: #{tpu_custom_call.1} parent=0
    #allocation2 [shape = 'u8[8192]{0}', space=vmem, size = 0x2000, scoped, tag = 'output window, operand 0, single buffered']
    #allocation3 [shape = 's32[1]{0}', space=sflag, size = 0x4, scoped, tag = 'scoped memory for tpu_custom_call.1']
    %10 = vsyncpa [#allocation3], 0
    // Predicated region
    $region2: #{tpu_custom_call.1} parent=1 // pred_check
      _
    $region3: #{tpu_custom_call.1} parent=1 // pred_check_branch
      %12 = sbr.rel (0) target = $region5
    $region4: #{tpu_custom_call.1} parent=1 // pred_region
      _
    $region5: #{tpu_custom_call.1} parent=1 // pred_fallthru
      _
    // Predicated region
    $region6: #{tpu_custom_call.1} parent=1 // pred_check
      _
    $region7: #{tpu_custom_call.1} parent=1 // pred_check_branch
      %14 = sbr.rel (0) target = $region9
    $region8: #{tpu_custom_call.1} parent=1 // pred_region
      _
    $region9: #{tpu_custom_call.1} parent=1 // pred_fallthru
      _
    // Predicated region
    $region10: #{tpu_custom_call.1} parent=1 // pred_check
      _
    $region11: #{tpu_custom_call.1} parent=1 // pred_check_branch
      %16 = sbr.rel (0) target = $region13
    $region12: #{tpu_custom_call.1} parent=1 // pred_region
      _
    $region13: #{tpu_custom_call.1} parent=1 // pred_fallthru
      _
    // Predicated region
    $region14: #{tpu_custom_call.1} parent=1 // pred_check
      _
    $region15: #{tpu_custom_call.1} parent=1 // pred_check_branch
      %18 = sbr.rel (0) target = $region17
    $region16: #{tpu_custom_call.1} parent=1 // pred_region
      _
    $region17: #{tpu_custom_call.1} parent=1 // pred_fallthru
      _
    // Predicated region
    $region18: #{tpu_custom_call.1} parent=1 // pred_check
      _
    $region19: #{tpu_custom_call.1} parent=1 // pred_check_branch
      %20 = sbr.rel (0) target = $region21
    $region20: #{tpu_custom_call.1} parent=1 // pred_region
      _
    $region21: #{tpu_custom_call.1} parent=1 // pred_fallthru
      _
    %v22 = vld [vmem:[%s0] sm:$0xf]
    %v23 = vld [vmem:[%s0 + $0x4] sm:$0xf]
    %v24 = vld [vmem:[%s1] sm:$0xff]
    %v25 = vld [vmem:[%s1 + $0x8] sm:$0xff]
    %v26 = vld [vmem:[%s1 + $0x10] sm:$0xff]
    %v27 = vld [vmem:[%s1 + $0x18] sm:$0xff]
    %v28 = vld [vmem:[%s2] sm:$0x3]
    %v30 = vlaneseq
    %v31 = vshrl.u32 %v30, 7
    %v32 = vsub.s32 0, %v31
    %v33 = vrot.slane %v28, %v32
    %v34 = vlaneseq
    %v35 = vshrl.u32 %v34, 7
    %v36 = vsub.s32 1, %v35
    %v37 = vrot.slane %v28, %v36
    %v42 = vunpack.c.l.b16 %v22
    %v43 = vunpack.c.l.b16 %v23
    %v44 = vpack.c.b16 %v43, %v42
    %v49 = vunpack.c.l.b16 %v24
    %v50 = vunpack.c.h.b16 %v24
    %v51 = vunpack.c.l.b16 %v25
    %v52 = vunpack.c.h.b16 %v25
    %v53 = vunpack.c.l.b16 %v26
    %v54 = vunpack.c.h.b16 %v26
    %v55 = vunpack.c.l.b16 %v27
    %v56 = vunpack.c.h.b16 %v27
    %v57 = vpack.c.b16 %v51, %v49
    %v58 = vpack.c.b16 %v52, %v50
    %v59 = vpack.c.b16 %v55, %v53
    %v60 = vpack.c.b16 %v56, %v54
    %vm65 = vcmask 261120
    %v67 = vsel %vm65, %v44, 0
    %69 = vmatprep.subr.bf16.mxu0 %v58
    %70 = vmatpush1.bf16.msra.mxu0 %v57
    %71 = vmatprep.subr.bf16.mxu0 %v60
    %72 = vmatpush1.bf16.msra.mxu0 %v59
    %73 = vmatprep.subr.bf16.mxu0 0
    %74 = vmatpush1.bf16.msra.mxu0 0
    %75 = vmatprep.subr.bf16.mxu0 0
    %76 = vmatpush1.bf16.msra.mxu0 0
    %77 = vmatprep.subr.bf16.mxu0 0
    %78 = vmatpush1.bf16.msra.mxu0 0
    %79 = vmatprep.subr.bf16.mxu0 0
    %80 = vmatpush1.bf16.msra.mxu0 0
    %81 = vmatprep.subr.bf16.mxu0 0
    %82 = vmatpush1.bf16.msra.mxu0 0
    %83 = vmatprep.subr.bf16.mxu0 0
    %84 = vmatpush1.bf16.msra.mxu0 0
    %85 = vmatprep.subr.bf16.mxu0 0
    %86 = vmatpush1.bf16.msra.mxu0 0
    %87 = vmatprep.subr.bf16.mxu0 0
    %88 = vmatpush1.bf16.msra.mxu0 0
    %89 = vmatprep.subr.bf16.mxu0 0
    %90 = vmatpush1.bf16.msra.mxu0 0
    %91 = vmatprep.subr.bf16.mxu0 0
    %92 = vmatpush1.bf16.msra.mxu0 0
    %93 = vmatprep.subr.bf16.mxu0 0
    %94 = vmatpush1.bf16.msra.mxu0 0
    %95 = vmatprep.subr.bf16.mxu0 0
    %96 = vmatpush1.bf16.msra.mxu0 0
    %97 = vmatprep.subr.bf16.mxu0 0
    %98 = vmatpush1.bf16.msra.mxu0 0
    %99 = vmatprep.subr.bf16.mxu0 0
    %100 = vmatpush1.bf16.msra.mxu0 0
    %101 = vmatprep.mubr.bf16.mxu0 0
    %102 = vmatmul.mubr.bf16.gmra.mrb[0].mxu0 %v67
    %v103 = vpop.f32.mrb[0].mxu0
    %v104 = vadd.f32 %v33, %v103
    %v105 = vpop.f32.mrb[0].mxu0
    %v106 = vadd.f32 %v37, %v105
    %v107 = vpop.f32.mrb[0].mxu0
    %v108 = vadd.f32 %v33, %v107
    %v109 = vpop.f32.mrb[0].mxu0
    %v110 = vadd.f32 %v37, %v109
    %111 = vdwg.mxu0
    %v112 = vtanh.pop %v104
    %v113 = vtanh.pop %v106
    %v114 = vtanh.pop %v108
    %v115 = vtanh.pop %v110
    %v116 = vpack.c.bf16 %v114, %v112
    %v117 = vpack.c.bf16 %v115, %v113
    %v118 = vld [vmem:[%s3] sm:$0xf]
    %v119 = vld [vmem:[%s3 + $0x4] sm:$0xf]
    %v120 = vld [vmem:[%s3 + $0x8] sm:$0xf]
    %v121 = vld [vmem:[%s3 + $0xc] sm:$0xf]
    %v122 = vld [vmem:[%s3 + $0x10] sm:$0xf]
    %v123 = vld [vmem:[%s3 + $0x14] sm:$0xf]
    %v124 = vld [vmem:[%s3 + $0x18] sm:$0xf]
    %v125 = vld [vmem:[%s3 + $0x1c] sm:$0xf]
    %v126 = vld [vmem:[%s3 + $0x20] sm:$0xf]
    %v127 = vld [vmem:[%s3 + $0x24] sm:$0xf]
    %v128 = vld [vmem:[%s3 + $0x28] sm:$0xf]
    %v129 = vld [vmem:[%s3 + $0x2c] sm:$0xf]
    %v130 = vld [vmem:[%s3 + $0x30] sm:$0xf]
    %v131 = vld [vmem:[%s3 + $0x34] sm:$0xf]
    %v132 = vld [vmem:[%s3 + $0x38] sm:$0xf]
    %v133 = vld [vmem:[%s3 + $0x3c] sm:$0xf]
    %v134 = vld [vmem:[%s3 + $0x40] sm:$0xf]
    %v135 = vld [vmem:[%s3 + $0x44] sm:$0xf]
    %v136 = vld [vmem:[%s3 + $0x48] sm:$0xf]
    %v137 = vld [vmem:[%s3 + $0x4c] sm:$0xf]
    %v138 = vld [vmem:[%s3 + $0x50] sm:$0xf]
    %v139 = vld [vmem:[%s3 + $0x54] sm:$0xf]
    %v140 = vld [vmem:[%s3 + $0x58] sm:$0xf]
    %v141 = vld [vmem:[%s3 + $0x5c] sm:$0xf]
    %v142 = vld [vmem:[%s3 + $0x60] sm:$0xf]
    %v143 = vld [vmem:[%s3 + $0x64] sm:$0xf]
    %v144 = vld [vmem:[%s3 + $0x68] sm:$0xf]
    %v145 = vld [vmem:[%s3 + $0x6c] sm:$0xf]
    %v146 = vld [vmem:[%s3 + $0x70] sm:$0xf]
    %v147 = vld [vmem:[%s3 + $0x74] sm:$0xf]
    %v148 = vld [vmem:[%s3 + $0x78] sm:$0xf]
    %v149 = vld [vmem:[%s3 + $0x7c] sm:$0xf]
    %v150 = vld [vmem:[%s4] sm:$0x1]
    %v152 = vlaneseq
    %v153 = vshrl.u32 %v152, 7
    %v154 = vsub.s32 0, %v153
    %v155 = vrot.slane %v150, %v154
    %v189 = vunpack.c.l.b16 %v118
    %v190 = vunpack.c.l.b16 %v119
    %v191 = vunpack.c.l.b16 %v120
    %v192 = vunpack.c.l.b16 %v121
    %v193 = vunpack.c.l.b16 %v122
    %v194 = vunpack.c.l.b16 %v123
    %v195 = vunpack.c.l.b16 %v124
    %v196 = vunpack.c.l.b16 %v125
    %v197 = vunpack.c.l.b16 %v126
    %v198 = vunpack.c.l.b16 %v127
    %v199 = vunpack.c.l.b16 %v128
    %v200 = vunpack.c.l.b16 %v129
    %v201 = vunpack.c.l.b16 %v130
    %v202 = vunpack.c.l.b16 %v131
    %v203 = vunpack.c.l.b16 %v132
    %v204 = vunpack.c.l.b16 %v133
    %v205 = vunpack.c.l.b16 %v134
    %v206 = vunpack.c.l.b16 %v135
    %v207 = vunpack.c.l.b16 %v136
    %v208 = vunpack.c.l.b16 %v137
    %v209 = vunpack.c.l.b16 %v138
    %v210 = vunpack.c.l.b16 %v139
    %v211 = vunpack.c.l.b16 %v140
    %v212 = vunpack.c.l.b16 %v141
    %v213 = vunpack.c.l.b16 %v142
    %v214 = vunpack.c.l.b16 %v143
    %v215 = vunpack.c.l.b16 %v144
    %v216 = vunpack.c.l.b16 %v145
    %v217 = vunpack.c.l.b16 %v146
    %v218 = vunpack.c.l.b16 %v147
    %v219 = vunpack.c.l.b16 %v148
    %v220 = vunpack.c.l.b16 %v149
    %v221 = vpack.c.b16 %v190, %v189
    %v222 = vpack.c.b16 %v192, %v191
    %v223 = vpack.c.b16 %v194, %v193
    %v224 = vpack.c.b16 %v196, %v195
    %v225 = vpack.c.b16 %v198, %v197
    %v226 = vpack.c.b16 %v200, %v199
    %v227 = vpack.c.b16 %v202, %v201
    %v228 = vpack.c.b16 %v204, %v203
    %v229 = vpack.c.b16 %v206, %v205
    %v230 = vpack.c.b16 %v208, %v207
    %v231 = vpack.c.b16 %v210, %v209
    %v232 = vpack.c.b16 %v212, %v211
    %v233 = vpack.c.b16 %v214, %v213
    %v234 = vpack.c.b16 %v216, %v215
    %v235 = vpack.c.b16 %v218, %v217
    %v236 = vpack.c.b16 %v220, %v219
    %253 = vmatprep.subr.bf16.mxu0 0
    %254 = vmatpush1.bf16.msra.mxu0 %v221
    %255 = vmatprep.subr.bf16.mxu0 0
    %256 = vmatpush1.bf16.msra.mxu0 %v222
    %257 = vmatprep.subr.bf16.mxu0 0
    %258 = vmatpush1.bf16.msra.mxu0 %v223
    %259 = vmatprep.subr.bf16.mxu0 0
    %260 = vmatpush1.bf16.msra.mxu0 %v224
    %261 = vmatprep.subr.bf16.mxu0 0
    %262 = vmatpush1.bf16.msra.mxu0 %v225
    %263 = vmatprep.subr.bf16.mxu0 0
    %264 = vmatpush1.bf16.msra.mxu0 %v226
    %265 = vmatprep.subr.bf16.mxu0 0
    %266 = vmatpush1.bf16.msra.mxu0 %v227
    %267 = vmatprep.subr.bf16.mxu0 0
    %268 = vmatpush1.bf16.msra.mxu0 %v228
    %269 = vmatprep.subr.bf16.mxu0 0
    %270 = vmatpush1.bf16.msra.mxu0 %v229
    %271 = vmatprep.subr.bf16.mxu0 0
    %272 = vmatpush1.bf16.msra.mxu0 %v230
    %273 = vmatprep.subr.bf16.mxu0 0
    %274 = vmatpush1.bf16.msra.mxu0 %v231
    %275 = vmatprep.subr.bf16.mxu0 0
    %276 = vmatpush1.bf16.msra.mxu0 %v232
    %277 = vmatprep.subr.bf16.mxu0 0
    %278 = vmatpush1.bf16.msra.mxu0 %v233
    %279 = vmatprep.subr.bf16.mxu0 0
    %280 = vmatpush1.bf16.msra.mxu0 %v234
    %281 = vmatprep.subr.bf16.mxu0 0
    %282 = vmatpush1.bf16.msra.mxu0 %v235
    %283 = vmatprep.subr.bf16.mxu0 0
    %284 = vmatpush1.bf16.msra.mxu0 %v236
    %285 = vmatprep.mubr.bf16.mxu0 %v117
    %286 = vmatmul.mubr.bf16.gmra.mrb[0].mxu0 %v116
    %v287 = vpop.f32.mrb[0].mxu0
    %v288 = vadd.f32 %v155, %v287
    %v289 = vpop.f32.mrb[0].mxu0
    %v290 = vpop.f32.mrb[0].mxu0
    %v291 = vadd.f32 %v155, %v290
    %v292 = vpop.f32.mrb[0].mxu0
    %293 = vdwg.mxu0
    %vm294 = vcmask 523264
    %295 = vst.msk [vmem:[#allocation2] sm:$0xff] %vm294, %v288
    %296 = vst.msk [vmem:[#allocation2 + $0x8] sm:$0xff] %vm294, %v291
    // Predicated region
    $region22: #{tpu_custom_call.1} parent=1 // pred_check
      _
    $region23: #{tpu_custom_call.1} parent=1 // pred_check_branch
      %298 = sbr.rel (0) target = $region25
    $region24: #{tpu_custom_call.1} parent=1 // pred_region
      %s300 = ssub.s32 256, 256
      %301 = vsyncadd [#allocation3], %s300
      %s302 = sshll.u32 [#allocation2], 4
      %s303 = int_to_ptr.vmem [resolvable:$true] %s302
      %308 = dma.vmem_to_hbm [thread:$0]  %s303, 256, %s5, [#allocation3], 128, 128, 8
    $region25: #{tpu_custom_call.1} parent=1 // pred_fallthru
      _
    // Predicated region
    $region26: #{tpu_custom_call.1} parent=1 // pred_check
      _
    $region27: #{tpu_custom_call.1} parent=1 // pred_check_branch
      %310 = sbr.rel (0) target = $region29
    $region28: #{tpu_custom_call.1} parent=1 // pred_region
      %311 = dma.done [#allocation3], 256
    $region29: #{tpu_custom_call.1} parent=1 // pred_fallthru
      _
    %312 = vsyncpa [#allocation3], 1

</llo_original>
